<compile_context>
chip_gen: v7x
topology: tpu7x:2x2x1
jax: 0.10.0
libtpu: 0.0.40
codegen_flags: <defaults>
</compile_context>

<pallas_src>
import jax
import jax.numpy as jnp
from jax.experimental import pallas as pl
from jax.experimental.pallas import tpu as pltpu

_LANE = 128
_SUBLANE = 8


def _span_scorer_kernel(idx_ref,    # VMEM (Bb, 2*Sp, 1) i32  [starts ; ends]
                        xs_ref,     # VMEM (Bb, T, H)    f32
                        w1s_ref,    # VMEM (H, U)        bf16  W1 rows for start vec
                        w1e_ref,    # VMEM (H, U)        bf16  W1 rows for end vec
                        b1_ref,     # VMEM (1, U)        f32
                        w2_ref,     # VMEM (U, Lp)       bf16  labels padded to 128
                        b2_ref,     # VMEM (1, Lp)       f32
                        out_ref):   # VMEM (Bb, Sp, Lp)  f32
    Bb, Sp2, _ = idx_ref.shape
    Sp = Sp2 // 2
    T = xs_ref.shape[1]
    H = xs_ref.shape[2]

    # Fused start+end one-hot endpoint gather on the MXU: one batched
    # (Bb, 2*Sp, T) @ (Bb, T, H) einsum instead of two per-endpoint dots.
    # Compare in int32, cast only the dot operands to bf16 (v5e-friendly).
    pos = jax.lax.broadcasted_iota(jnp.int32, (Bb, Sp2, T), 2)
    oh = (pos == idx_ref[...]).astype(jnp.bfloat16)                 # (Bb, 2*Sp, T)

    xs_bf16 = xs_ref[...].astype(jnp.bfloat16)                      # (Bb, T, H)
    gathered = jnp.einsum("bst,bth->bsh", oh, xs_bf16,
                          preferred_element_type=jnp.float32)       # (Bb, 2*Sp, H)

    # Flatten batch*span rows so the MLP matmuls see a large M dim (Bb*Sp rows).
    x_start = gathered[:, :Sp, :].reshape(Bb * Sp, H).astype(jnp.bfloat16)
    x_end = gathered[:, Sp:, :].reshape(Bb * Sp, H).astype(jnp.bfloat16)

    # Layer 1: concat([x_start, x_end]) @ W1 + b1 == x_start@W1[:H] + x_end@W1[H:] + b1
    h = (jnp.dot(x_start, w1s_ref[...], preferred_element_type=jnp.float32)
         + jnp.dot(x_end, w1e_ref[...], preferred_element_type=jnp.float32)
         + b1_ref[...])
    h = jnp.maximum(h, 0.0)                                         # ReLU in f32

    # Layer 2 (output lanes padded to 128 -> unmasked, lane-dense stores).
    scores = (jnp.dot(h.astype(jnp.bfloat16), w2_ref[...],
                      preferred_element_type=jnp.float32) + b2_ref[...])
    out_ref[...] = scores.reshape(Bb, Sp, -1).astype(out_ref.dtype)


def _choose_batch_block(B, Sp, T, H, U, Lp):
    """Batch items per grid step: fill the MXU M dim (Bb*Sp rows) and amortize the
    ~0.35 us/step fixed overhead, within a VMEM budget that also fits v7x."""
    rows_target = 256                       # v6e/v7x MXU M; 128 suffices on v5e
    bb_rows = -(-rows_target // Sp)
    budget = 36 * 1024 * 1024               # leave headroom under the 48 MiB limit
    weight_bytes = 2 * H * U * 2 + U * Lp * 2 + (U + Lp) * 4   # single-buffered bf16
    per_b = (2 * T * H * 4                  # xs block, double-buffered f32
             + 2 * Sp * Lp * 4              # out block, double-buffered f32
             + 2 * 2 * Sp * _LANE * 4       # span-index block (lane-padded i32)
             + 2 * Sp * T * 2               # one-hot bf16 temporary
             + 2 * Sp * H * 6               # gathered rows f32 + bf16 copies
             + Sp * U * 6                   # hidden f32 + bf16 copy
             + Sp * Lp * 4)                 # scores temporary
    bb_vmem = max(1, (budget - weight_bytes) // per_b)
    return int(max(1, min(B, bb_rows, bb_vmem)))


@jax.jit
def baseline_span_scorer_forward(xs, spans, w1, b1, w2, b2):
    """xs: (B, T, H) f32; spans: (B, S, 2) int32 (start, end) token indices.

    w1: (2H, U), b1: (U,), w2: (U, L), b2: (L,).
    Returns scores (B, S, L) f32.
    """
    B, T, H = xs.shape
    _, S, _ = spans.shape
    U = w1.shape[1]
    L = w2.shape[1]

    Lp = ((L + _LANE - 1) // _LANE) * _LANE          # lane-dense output width
    Sp = ((S + _SUBLANE - 1) // _SUBLANE) * _SUBLANE # sublane-aligned span rows

    # Clamp span indices (defensive; one-hot gather cannot read OOB VMEM anyway).
    # NOTE: genuinely out-of-range spans are remapped instead of erroring like
    # the PyTorch gather would.
    spans = jnp.clip(spans.astype(jnp.int32), 0, T - 1)
    if Sp != S:
        spans = jnp.pad(spans, ((0, 0), (0, Sp - S), (0, 0)))   # dummy (0,0) spans
    # Single span-index input: [starts ; ends] stacked along the span axis.
    idx = jnp.concatenate([spans[:, :, 0], spans[:, :, 1]], axis=1)[:, :, None]

    Bb = _choose_batch_block(B, Sp, T, H, U, Lp)
    nB = -(-B // Bb)
    Bpad = nB * Bb
    if Bpad != B:
        xs = jnp.pad(xs, ((0, Bpad - B), (0, 0), (0, 0)))
        idx = jnp.pad(idx, ((0, Bpad - B), (0, 0), (0, 0)))

    # bf16 weight copies (halves weight DMA/VMEM); biases stay f32.
    w1s = w1[:H].astype(jnp.bfloat16)                            # (H, U)
    w1e = w1[H:].astype(jnp.bfloat16)                            # (H, U)
    b1_row = b1.reshape(1, U).astype(jnp.float32)
    w2_pad = jnp.pad(w2, ((0, 0), (0, Lp - L))).astype(jnp.bfloat16)   # (U, Lp)
    b2_row = jnp.pad(b2, (0, Lp - L)).reshape(1, Lp).astype(jnp.float32)

    # Weight/bias blocks never change across the grid -> single-buffer them.
    const = dict(pipeline_mode=pl.Buffered(1))

    out = pl.pallas_call(
        _span_scorer_kernel,
        out_shape=jax.ShapeDtypeStruct((Bpad, Sp, Lp), jnp.float32),
        grid_spec=pltpu.PrefetchScalarGridSpec(
            num_scalar_prefetch=0,
            grid=(nB,),
            in_specs=[
                pl.BlockSpec((Bb, 2 * Sp, 1), lambda i: (i, 0, 0)),  # span idxs
                pl.BlockSpec((Bb, T, H), lambda i: (i, 0, 0)),       # xs
                pl.BlockSpec((H, U), lambda i: (0, 0), **const),     # W1[:H]
                pl.BlockSpec((H, U), lambda i: (0, 0), **const),     # W1[H:]
                pl.BlockSpec((1, U), lambda i: (0, 0), **const),     # b1
                pl.BlockSpec((U, Lp), lambda i: (0, 0), **const),    # W2 (padded)
                pl.BlockSpec((1, Lp), lambda i: (0, 0), **const),    # b2 (padded)
            ],
            out_specs=pl.BlockSpec((Bb, Sp, Lp), lambda i: (i, 0, 0)),
        ),
        compiler_params=pltpu.CompilerParams(
            dimension_semantics=("parallel",),
            vmem_limit_bytes=48 * 1024 * 1024,
        ),
    )(idx, xs, w1s, w1e, b1_row, w2_pad, b2_row)

    return out[:B, :S, :L]


def baseline_span_scorer_reference(xs, spans, w1, b1, w2, b2):
    B = xs.shape[0]
    b_idx = jnp.arange(B)[:, None]
    x_start = xs[b_idx, spans[:, :, 0]]                          # (B, S, H)
    x_end = xs[b_idx, spans[:, :, 1]]                            # (B, S, H)
    feats = jnp.concatenate([x_start, x_end], axis=-1)           # (B, S, 2H)
    h = jnp.maximum(feats @ w1 + b1, 0.0)
    return h @ w2 + b2


if __name__ == "__main__":
    # Small deterministic problem sizes.
    B, T, H = 2, 16, 32       # batch, seq length, hidden
    S = 8                     # spans per batch element
    mlp_units = 64            # MLP hidden units
    num_labels = 8

    key = jax.random.PRNGKey(0)
    k_xs, k_w1, k_b1, k_w2, k_b2, k_sp, k_len = jax.random.split(key, 7)

    xs = jax.random.normal(k_xs, (B, T, H), dtype=jnp.float32)

    # MLP(2H -> mlp_units -> num_labels) parameters.
    w1 = (jax.random.normal(k_w1, (2 * H, mlp_units), dtype=jnp.float32)
          / jnp.sqrt(2.0 * H))
    b1 = jax.random.normal(k_b1, (mlp_units,), dtype=jnp.float32) * 0.01
    w2 = (jax.random.normal(k_w2, (mlp_units, num_labels), dtype=jnp.float32)
          / jnp.sqrt(1.0 * mlp_units))
    b2 = jax.random.normal(k_b2, (num_labels,), dtype=jnp.float32) * 0.01

    # Random (start <= end) spans within [0, T).
    starts = jax.random.randint(k_sp, (B, S), 0, T, dtype=jnp.int32)
    lengths = jax.random.randint(k_len, (B, S), 0, 4, dtype=jnp.int32)
    ends = jnp.minimum(starts + lengths, T - 1)
    spans = jnp.stack([starts, ends], axis=-1).astype(jnp.int32)   # (B, S, 2)

    scores = baseline_span_scorer_forward(xs, spans, w1, b1, w2, b2)
    scores = jax.block_until_ready(scores)

    ref = baseline_span_scorer_reference(xs, spans, w1, b1, w2, b2)
    assert scores.shape == (B, S, num_labels)
    # bf16 matmul operands with f32 accumulation -> looser tolerance vs f32 ref.
    assert jnp.allclose(scores, ref, atol=5e-2, rtol=5e-2), "mismatch vs reference"

    # Sequence[Tensor]-style return: one (S, num_labels) tensor per batch item.
    per_batch_scores = [scores[b] for b in range(B)]
    _ = jax.block_until_ready(per_batch_scores)

    print("KERNEL_OK")
</pallas_src>

<mosaic_0001>
module attributes {stable_mosaic.version = 11 : i64} {
  func.func @_span_scorer_kernel(%arg0: i32, %arg1: memref<2x16x1xi32, #tpu.memory_space<vmem>>, %arg2: memref<2x16x32xf32, #tpu.memory_space<vmem>>, %arg3: memref<32x64xbf16, #tpu.memory_space<vmem>>, %arg4: memref<32x64xbf16, #tpu.memory_space<vmem>>, %arg5: memref<1x64xf32, #tpu.memory_space<vmem>>, %arg6: memref<64x128xbf16, #tpu.memory_space<vmem>>, %arg7: memref<1x128xf32, #tpu.memory_space<vmem>>, %arg8: memref<2x8x128xf32, #tpu.memory_space<vmem>>) attributes {dimension_semantics = [#tpu.dimension_semantics<parallel>], iteration_bounds = array<i64: 1>, scalar_prefetch = 0 : i64, scratch_operands = 0 : i64, tpu.core_type = #tpu.core_type<tc>, window_params = [{transform_indices = @transform_0, window_bounds = array<i64: 2, 16, 1>}, {transform_indices = @transform_1, window_bounds = array<i64: 2, 16, 32>}, {pipeline_mode = #tpu.pipeline_mode<synchronous>, transform_indices = @transform_2, window_bounds = array<i64: 32, 64>}, {pipeline_mode = #tpu.pipeline_mode<synchronous>, transform_indices = @transform_3, window_bounds = array<i64: 32, 64>}, {pipeline_mode = #tpu.pipeline_mode<synchronous>, transform_indices = @transform_4, window_bounds = array<i64: 1, 64>}, {pipeline_mode = #tpu.pipeline_mode<synchronous>, transform_indices = @transform_5, window_bounds = array<i64: 64, 128>}, {pipeline_mode = #tpu.pipeline_mode<synchronous>, transform_indices = @transform_6, window_bounds = array<i64: 1, 128>}, {transform_indices = @transform_7, window_bounds = array<i64: 2, 8, 128>}]} {
    %0 = tpu.iota {dimensions = array<i32: 2>} : vector<2x16x16xi32>
    %c0 = arith.constant 0 : index
    %c0_0 = arith.constant 0 : index
    %c0_1 = arith.constant 0 : index
    %1 = vector.load %arg1[%c0, %c0_0, %c0_1] : memref<2x16x1xi32, #tpu.memory_space<vmem>>, vector<2x16x1xi32>
    %2 = vector.broadcast %1 : vector<2x16x1xi32> to vector<2x16x16xi32>
    %3 = arith.cmpi eq, %0, %2 : vector<2x16x16xi32>
    %4 = arith.extui %3 : vector<2x16x16xi1> to vector<2x16x16xi32>
    %5 = arith.sitofp %4 : vector<2x16x16xi32> to vector<2x16x16xf32>
    %6 = arith.truncf %5 : vector<2x16x16xf32> to vector<2x16x16xbf16>
    %c0_2 = arith.constant 0 : index
    %c0_3 = arith.constant 0 : index
    %c0_4 = arith.constant 0 : index
    %7 = vector.load %arg2[%c0_2, %c0_3, %c0_4] : memref<2x16x32xf32, #tpu.memory_space<vmem>>, vector<2x16x32xf32>
    %8 = arith.truncf %7 : vector<2x16x32xf32> to vector<2x16x32xbf16>
    "tpu.trace_start"() <{level = 10 : i32, message = "bst,bth->bsh"}> : () -> ()
    %cst = arith.constant dense<0.000000e+00> : vector<2x16x32xf32>
    %9 = tpu.matmul %6, %8, %cst {dimension_numbers = #tpu.dot_dimension_numbers<[2], [1], [1], [2], [0, 0, 0, 1, 1, 2], [0], [0]>} : vector<2x16x16xbf16>, vector<2x16x32xbf16>, vector<2x16x32xf32> -> vector<2x16x32xf32>
    "tpu.trace_stop"() : () -> ()
    %10 = vector.extract_strided_slice %9 {offsets = [0, 0, 0], sizes = [2, 8, 32], strides = [1, 1, 1]} : vector<2x16x32xf32> to vector<2x8x32xf32>
    %11 = vector.shape_cast %10 : vector<2x8x32xf32> to vector<16x32xf32>
    %12 = arith.truncf %11 : vector<16x32xf32> to vector<16x32xbf16>
    %13 = vector.extract_strided_slice %9 {offsets = [0, 8, 0], sizes = [2, 8, 32], strides = [1, 1, 1]} : vector<2x16x32xf32> to vector<2x8x32xf32>
    %14 = vector.shape_cast %13 : vector<2x8x32xf32> to vector<16x32xf32>
    %15 = arith.truncf %14 : vector<16x32xf32> to vector<16x32xbf16>
    %c0_5 = arith.constant 0 : index
    %c0_6 = arith.constant 0 : index
    %16 = vector.load %arg3[%c0_5, %c0_6] : memref<32x64xbf16, #tpu.memory_space<vmem>>, vector<32x64xbf16>
    %cst_7 = arith.constant dense<0.000000e+00> : vector<16x64xf32>
    %17 = tpu.matmul %12, %16, %cst_7 {dimension_numbers = #tpu.dot_dimension_numbers<[1], [0], [0], [1], [0, 0, 1, 1], [], []>} : vector<16x32xbf16>, vector<32x64xbf16>, vector<16x64xf32> -> vector<16x64xf32>
    %c0_8 = arith.constant 0 : index
    %c0_9 = arith.constant 0 : index
    %18 = vector.load %arg4[%c0_8, %c0_9] : memref<32x64xbf16, #tpu.memory_space<vmem>>, vector<32x64xbf16>
    %cst_10 = arith.constant dense<0.000000e+00> : vector<16x64xf32>
    %19 = tpu.matmul %15, %18, %cst_10 {dimension_numbers = #tpu.dot_dimension_numbers<[1], [0], [0], [1], [0, 0, 1, 1], [], []>} : vector<16x32xbf16>, vector<32x64xbf16>, vector<16x64xf32> -> vector<16x64xf32>
    %20 = arith.addf %17, %19 : vector<16x64xf32>
    %c0_11 = arith.constant 0 : index
    %c0_12 = arith.constant 0 : index
    %21 = vector.load %arg5[%c0_11, %c0_12] : memref<1x64xf32, #tpu.memory_space<vmem>>, vector<1x64xf32>
    %22 = vector.broadcast %21 : vector<1x64xf32> to vector<16x64xf32>
    %23 = arith.addf %20, %22 : vector<16x64xf32>
    %cst_13 = arith.constant 0.000000e+00 : f32
    %24 = vector.broadcast %cst_13 : f32 to vector<16x64xf32>
    %25 = arith.maximumf %23, %24 : vector<16x64xf32>
    %26 = arith.truncf %25 : vector<16x64xf32> to vector<16x64xbf16>
    %c0_14 = arith.constant 0 : index
    %c0_15 = arith.constant 0 : index
    %27 = vector.load %arg6[%c0_14, %c0_15] : memref<64x128xbf16, #tpu.memory_space<vmem>>, vector<64x128xbf16>
    %cst_16 = arith.constant dense<0.000000e+00> : vector<16x128xf32>
    %28 = tpu.matmul %26, %27, %cst_16 {dimension_numbers = #tpu.dot_dimension_numbers<[1], [0], [0], [1], [0, 0, 1, 1], [], []>} : vector<16x64xbf16>, vector<64x128xbf16>, vector<16x128xf32> -> vector<16x128xf32>
    %c0_17 = arith.constant 0 : index
    %c0_18 = arith.constant 0 : index
    %29 = vector.load %arg7[%c0_17, %c0_18] : memref<1x128xf32, #tpu.memory_space<vmem>>, vector<1x128xf32>
    %30 = vector.broadcast %29 : vector<1x128xf32> to vector<16x128xf32>
    %31 = arith.addf %28, %30 : vector<16x128xf32>
    %32 = vector.shape_cast %31 : vector<16x128xf32> to vector<2x8x128xf32>
    %c0_19 = arith.constant 0 : index
    %c0_20 = arith.constant 0 : index
    %c0_21 = arith.constant 0 : index
    %33 = vector.load %arg8[%c0_19, %c0_20, %c0_21] : memref<2x8x128xf32, #tpu.memory_space<vmem>>, vector<2x8x128xf32>
    tpu.vector_store %arg8[%c0_19, %c0_20, %c0_21], %32 {strides = array<i32>} : memref<2x8x128xf32, #tpu.memory_space<vmem>>, vector<2x8x128xf32>,
    return
  }
  func.func @transform_0(%arg0: i32) -> (i32, i32, i32) {
    %c0_i32 = arith.constant 0 : i32
    %c0_i32_0 = arith.constant 0 : i32
    %c0_i32_1 = arith.constant 0 : i32
    return %arg0, %c0_i32, %c0_i32_0 : i32, i32, i32
  }
  func.func @transform_1(%arg0: i32) -> (i32, i32, i32) {
    %c0_i32 = arith.constant 0 : i32
    %c0_i32_0 = arith.constant 0 : i32
    %c0_i32_1 = arith.constant 0 : i32
    return %arg0, %c0_i32, %c0_i32_0 : i32, i32, i32
  }
  func.func @transform_2(%arg0: i32) -> (i32, i32) {
    %c0_i32 = arith.constant 0 : i32
    %c0_i32_0 = arith.constant 0 : i32
    %c0_i32_1 = arith.constant 0 : i32
    return %c0_i32, %c0_i32_0 : i32, i32
  }
  func.func @transform_3(%arg0: i32) -> (i32, i32) {
    %c0_i32 = arith.constant 0 : i32
    %c0_i32_0 = arith.constant 0 : i32
    %c0_i32_1 = arith.constant 0 : i32
    return %c0_i32, %c0_i32_0 : i32, i32
  }
  func.func @transform_4(%arg0: i32) -> (i32, i32) {
    %c0_i32 = arith.constant 0 : i32
    %c0_i32_0 = arith.constant 0 : i32
    %c0_i32_1 = arith.constant 0 : i32
    return %c0_i32, %c0_i32_0 : i32, i32
  }
  func.func @transform_5(%arg0: i32) -> (i32, i32) {
    %c0_i32 = arith.constant 0 : i32
    %c0_i32_0 = arith.constant 0 : i32
    %c0_i32_1 = arith.constant 0 : i32
    return %c0_i32, %c0_i32_0 : i32, i32
  }
  func.func @transform_6(%arg0: i32) -> (i32, i32) {
    %c0_i32 = arith.constant 0 : i32
    %c0_i32_0 = arith.constant 0 : i32
    %c0_i32_1 = arith.constant 0 : i32
    return %c0_i32, %c0_i32_0 : i32, i32
  }
  func.func @transform_7(%arg0: i32) -> (i32, i32, i32) {
    %c0_i32 = arith.constant 0 : i32
    %c0_i32_0 = arith.constant 0 : i32
    %c0_i32_1 = arith.constant 0 : i32
    return %arg0, %c0_i32, %c0_i32_0 : i32, i32, i32
  }
}

</mosaic_0001>

<llo_original>
// kernel: baseline_span_scorer_forward.1
$region0: #{baseline_span_scorer_forward.1}
  #allocation0 [shape = 'u32[]', space=smem, size = 0x4, offset = 0x4, fixed_abs, tag = 'smem constant byte address 0x4 - core index']
  #allocation1 [shape = 'u32[144,128]{1,0:T(1,128)}', space=vmem, size = 0x12000, scoped, tag = 'internal scratch']
  %s0 = inlined_call_operand.vmem [shape: s32[2,16,1], index: 0, kind: input, shape index: {}]
  %s1 = inlined_call_operand.vmem [shape: f32[2,16,32], index: 1, kind: input, shape index: {}]
  %s2 = inlined_call_operand.vmem [shape: bf16[32,64], index: 2, kind: input, shape index: {}]
  %s3 = inlined_call_operand.vmem [shape: bf16[32,64], index: 3, kind: input, shape index: {}]
  %s4 = inlined_call_operand.vmem [shape: f32[1,64], index: 4, kind: input, shape index: {}]
  %s5 = inlined_call_operand.vmem [shape: bf16[64,128], index: 5, kind: input, shape index: {}]
  %s6 = inlined_call_operand.vmem [shape: f32[1,128], index: 6, kind: input, shape index: {}]
  %s7 = inlined_call_operand.hbm [shape: f32[2,8,128], index: 7, kind: output, shape index: {}]
  %s8 = sld [smem:[#allocation0]]
  $region38: #{baseline_span_scorer_forward.1} parent=0
    _
  %s10 = ssub.s32 1, %s8
  %s11 = scalar_select 0, %s10, %s8
  $region1: #{baseline_span_scorer_forward.1} parent=0
    #allocation2 [shape = 'u8[8192]{0}', space=vmem, size = 0x2000, scoped, tag = 'output window, operand 0, single buffered']
    #allocation3 [shape = 's32[1]{0}', space=sflag, size = 0x4, scoped, tag = 'scoped memory for baseline_span_scorer_forward.1']
    %12 = vsyncpa [#allocation3], 0
    // Predicated region
    $region2: #{baseline_span_scorer_forward.1} parent=1 // pred_check
      _
    $region3: #{baseline_span_scorer_forward.1} parent=1 // pred_check_branch
      %14 = sbr.rel (0) target = $region5
    $region4: #{baseline_span_scorer_forward.1} parent=1 // pred_region
      _
    $region5: #{baseline_span_scorer_forward.1} parent=1 // pred_fallthru
      _
    // Predicated region
    $region6: #{baseline_span_scorer_forward.1} parent=1 // pred_check
      _
    $region7: #{baseline_span_scorer_forward.1} parent=1 // pred_check_branch
      %16 = sbr.rel (0) target = $region9
    $region8: #{baseline_span_scorer_forward.1} parent=1 // pred_region
      _
    $region9: #{baseline_span_scorer_forward.1} parent=1 // pred_fallthru
      _
    // Predicated region
    $region10: #{baseline_span_scorer_forward.1} parent=1 // pred_check
      _
    $region11: #{baseline_span_scorer_forward.1} parent=1 // pred_check_branch
      %18 = sbr.rel (0) target = $region13
    $region12: #{baseline_span_scorer_forward.1} parent=1 // pred_region
      _
    $region13: #{baseline_span_scorer_forward.1} parent=1 // pred_fallthru
      _
    // Predicated region
    $region14: #{baseline_span_scorer_forward.1} parent=1 // pred_check
      _
    $region15: #{baseline_span_scorer_forward.1} parent=1 // pred_check_branch
      %20 = sbr.rel (0) target = $region17
    $region16: #{baseline_span_scorer_forward.1} parent=1 // pred_region
      _
    $region17: #{baseline_span_scorer_forward.1} parent=1 // pred_fallthru
      _
    // Predicated region
    $region18: #{baseline_span_scorer_forward.1} parent=1 // pred_check
      _
    $region19: #{baseline_span_scorer_forward.1} parent=1 // pred_check_branch
      %22 = sbr.rel (0) target = $region21
    $region20: #{baseline_span_scorer_forward.1} parent=1 // pred_region
      _
    $region21: #{baseline_span_scorer_forward.1} parent=1 // pred_fallthru
      _
    // Predicated region
    $region22: #{baseline_span_scorer_forward.1} parent=1 // pred_check
      _
    $region23: #{baseline_span_scorer_forward.1} parent=1 // pred_check_branch
      %24 = sbr.rel (0) target = $region25
    $region24: #{baseline_span_scorer_forward.1} parent=1 // pred_region
      _
    $region25: #{baseline_span_scorer_forward.1} parent=1 // pred_fallthru
      _
    // Predicated region
    $region26: #{baseline_span_scorer_forward.1} parent=1 // pred_check
      _
    $region27: #{baseline_span_scorer_forward.1} parent=1 // pred_check_branch
      %26 = sbr.rel (0) target = $region29
    $region28: #{baseline_span_scorer_forward.1} parent=1 // pred_region
      _
    $region29: #{baseline_span_scorer_forward.1} parent=1 // pred_fallthru
      _
    %v28 = vlaneseq
    %v29 = vand.u32 %v28, 127
    %v30 = vld [vmem:[%s0] sm:$0xff]
    %v31 = vld [vmem:[%s0 + $0x8] sm:$0xff]
    %v32 = vld [vmem:[%s0 + $0x10] sm:$0xff]
    %v33 = vld [vmem:[%s0 + $0x18] sm:$0xff]
    %34 = vset.pattern.permute.xlu0 0
    %35 = vperm.xlu0 %34, %v30
    %v36 = vpop.permute.xlu0 %35
    %37 = vset.pattern.permute.xlu0 0
    %38 = vperm.xlu0 %37, %v31
    %v39 = vpop.permute.xlu0 %38
    %40 = vset.pattern.permute.xlu0 0
    %41 = vperm.xlu0 %40, %v32
    %v42 = vpop.permute.xlu0 %41
    %43 = vset.pattern.permute.xlu0 0
    %44 = vperm.xlu0 %43, %v33
    %v45 = vpop.permute.xlu0 %44
    %vm46 = vcmp.eq.s32.totalorder %v29, %v36
    %vm47 = vcmp.eq.s32.totalorder %v29, %v39
    %vm48 = vcmp.eq.s32.totalorder %v29, %v42
    %vm49 = vcmp.eq.s32.totalorder %v29, %v45
    %v50 = vsel %vm46, 1, 0
    %v51 = vsel %vm47, 1, 0
    %v52 = vsel %vm48, 1, 0
    %v53 = vsel %vm49, 1, 0
    %v54 = vcvt.s32.f32 %v50
    %v55 = vcvt.s32.f32 %v51
    %v56 = vcvt.s32.f32 %v52
    %v57 = vcvt.s32.f32 %v53
    %v58 = vpack.c.bf16 %v55, %v54
    %v59 = vpack.c.bf16 %v57, %v56
    %v60 = vld [vmem:[%s1] sm:$0xff]
    %v61 = vld [vmem:[%s1 + $0x8] sm:$0xff]
    %v62 = vld [vmem:[%s1 + $0x10] sm:$0xff]
    %v63 = vld [vmem:[%s1 + $0x18] sm:$0xff]
    %v64 = vpack.c.bf16 %v61, %v60
    %v65 = vpack.c.bf16 %v63, %v62
    %vm66 = vcmask 130048
    %v68 = vsel %vm66, %v58, 0
    %70 = vmatprep.subr.bf16.mxu0 0
    %71 = vmatpush1.bf16.msra.mxu0 %v64
    %72 = vmatprep.subr.bf16.mxu0 0
    %73 = vmatpush1.bf16.msra.mxu0 0
    %74 = vmatprep.subr.bf16.mxu0 0
    %75 = vmatpush1.bf16.msra.mxu0 0
    %76 = vmatprep.subr.bf16.mxu0 0
    %77 = vmatpush1.bf16.msra.mxu0 0
    %78 = vmatprep.subr.bf16.mxu0 0
    %79 = vmatpush1.bf16.msra.mxu0 0
    %80 = vmatprep.subr.bf16.mxu0 0
    %81 = vmatpush1.bf16.msra.mxu0 0
    %82 = vmatprep.subr.bf16.mxu0 0
    %83 = vmatpush1.bf16.msra.mxu0 0
    %84 = vmatprep.subr.bf16.mxu0 0
    %85 = vmatpush1.bf16.msra.mxu0 0
    %86 = vmatprep.subr.bf16.mxu0 0
    %87 = vmatpush1.bf16.msra.mxu0 0
    %88 = vmatprep.subr.bf16.mxu0 0
    %89 = vmatpush1.bf16.msra.mxu0 0
    %90 = vmatprep.subr.bf16.mxu0 0
    %91 = vmatpush1.bf16.msra.mxu0 0
    %92 = vmatprep.subr.bf16.mxu0 0
    %93 = vmatpush1.bf16.msra.mxu0 0
    %94 = vmatprep.subr.bf16.mxu0 0
    %95 = vmatpush1.bf16.msra.mxu0 0
    %96 = vmatprep.subr.bf16.mxu0 0
    %97 = vmatpush1.bf16.msra.mxu0 0
    %98 = vmatprep.subr.bf16.mxu0 0
    %99 = vmatpush1.bf16.msra.mxu0 0
    %100 = vmatprep.subr.bf16.mxu0 0
    %101 = vmatpush1.bf16.msra.mxu0 0
    %102 = vmatprep.mubr.bf16.mxu0 0
    %103 = vmatmul.mubr.bf16.gmra.mrb[0].mxu0 %v68
    %v104 = vpop.f32.mrb[0].mxu0
    %v105 = vadd.f32 0.0, %v104
    %v106 = vpop.f32.mrb[0].mxu0
    %v107 = vpop.f32.mrb[0].mxu0
    %v108 = vadd.f32 0.0, %v107
    %v109 = vpop.f32.mrb[0].mxu0
    %110 = vdwg.mxu0
    %v112 = vsel %vm66, %v59, 0
    %114 = vmatprep.subr.bf16.mxu0 0
    %115 = vmatpush1.bf16.msra.mxu0 %v65
    %116 = vmatprep.subr.bf16.mxu0 0
    %117 = vmatpush1.bf16.msra.mxu0 0
    %118 = vmatprep.subr.bf16.mxu0 0
    %119 = vmatpush1.bf16.msra.mxu0 0
    %120 = vmatprep.subr.bf16.mxu0 0
    %121 = vmatpush1.bf16.msra.mxu0 0
    %122 = vmatprep.subr.bf16.mxu0 0
    %123 = vmatpush1.bf16.msra.mxu0 0
    %124 = vmatprep.subr.bf16.mxu0 0
    %125 = vmatpush1.bf16.msra.mxu0 0
    %126 = vmatprep.subr.bf16.mxu0 0
    %127 = vmatpush1.bf16.msra.mxu0 0
    %128 = vmatprep.subr.bf16.mxu0 0
    %129 = vmatpush1.bf16.msra.mxu0 0
    %130 = vmatprep.subr.bf16.mxu0 0
    %131 = vmatpush1.bf16.msra.mxu0 0
    %132 = vmatprep.subr.bf16.mxu0 0
    %133 = vmatpush1.bf16.msra.mxu0 0
    %134 = vmatprep.subr.bf16.mxu0 0
    %135 = vmatpush1.bf16.msra.mxu0 0
    %136 = vmatprep.subr.bf16.mxu0 0
    %137 = vmatpush1.bf16.msra.mxu0 0
    %138 = vmatprep.subr.bf16.mxu0 0
    %139 = vmatpush1.bf16.msra.mxu0 0
    %140 = vmatprep.subr.bf16.mxu0 0
    %141 = vmatpush1.bf16.msra.mxu0 0
    %142 = vmatprep.subr.bf16.mxu0 0
    %143 = vmatpush1.bf16.msra.mxu0 0
    %144 = vmatprep.subr.bf16.mxu0 0
    %145 = vmatpush1.bf16.msra.mxu0 0
    %146 = vmatprep.mubr.bf16.mxu0 0
    %147 = vmatmul.mubr.bf16.gmra.mrb[0].mxu0 %v112
    %v148 = vpop.f32.mrb[0].mxu0
    %v149 = vadd.f32 0.0, %v148
    %v150 = vpop.f32.mrb[0].mxu0
    %v151 = vpop.f32.mrb[0].mxu0
    %v152 = vadd.f32 0.0, %v151
    %v153 = vpop.f32.mrb[0].mxu0
    %154 = vdwg.mxu0
    %v155 = vpack.c.bf16 %v149, %v105
    %v156 = vpack.c.bf16 %v152, %v108
    %v157 = vld [vmem:[%s2] sm:$0xf]
    %v158 = vld [vmem:[%s2 + $0x4] sm:$0xf]
    %v159 = vld [vmem:[%s2 + $0x8] sm:$0xf]
    %v160 = vld [vmem:[%s2 + $0xc] sm:$0xf]
    %v161 = vld [vmem:[%s3] sm:$0xf]
    %v162 = vld [vmem:[%s3 + $0x4] sm:$0xf]
    %v163 = vld [vmem:[%s3 + $0x8] sm:$0xf]
    %v164 = vld [vmem:[%s3 + $0xc] sm:$0xf]
    %v169 = vunpack.c.l.b16 %v161
    %v170 = vunpack.c.l.b16 %v162
    %v171 = vunpack.c.l.b16 %v163
    %v172 = vunpack.c.l.b16 %v164
    %v173 = vpack.c.b16 %v170, %v169
    %v174 = vpack.c.b16 %v172, %v171
    %vm177 = vcmask 261120
    %v179 = vsel %vm177, %v156, 0
    %181 = vmatprep.subr.bf16.mxu0 0
    %182 = vmatpush1.bf16.msra.mxu0 %v173
    %183 = vmatprep.subr.bf16.mxu0 0
    %184 = vmatpush1.bf16.msra.mxu0 %v174
    %185 = vmatprep.subr.bf16.mxu0 0
    %186 = vmatpush1.bf16.msra.mxu0 0
    %187 = vmatprep.subr.bf16.mxu0 0
    %188 = vmatpush1.bf16.msra.mxu0 0
    %189 = vmatprep.subr.bf16.mxu0 0
    %190 = vmatpush1.bf16.msra.mxu0 0
    %191 = vmatprep.subr.bf16.mxu0 0
    %192 = vmatpush1.bf16.msra.mxu0 0
    %193 = vmatprep.subr.bf16.mxu0 0
    %194 = vmatpush1.bf16.msra.mxu0 0
    %195 = vmatprep.subr.bf16.mxu0 0
    %196 = vmatpush1.bf16.msra.mxu0 0
    %197 = vmatprep.subr.bf16.mxu0 0
    %198 = vmatpush1.bf16.msra.mxu0 0
    %199 = vmatprep.subr.bf16.mxu0 0
    %200 = vmatpush1.bf16.msra.mxu0 0
    %201 = vmatprep.subr.bf16.mxu0 0
    %202 = vmatpush1.bf16.msra.mxu0 0
    %203 = vmatprep.subr.bf16.mxu0 0
    %204 = vmatpush1.bf16.msra.mxu0 0
    %205 = vmatprep.subr.bf16.mxu0 0
    %206 = vmatpush1.bf16.msra.mxu0 0
    %207 = vmatprep.subr.bf16.mxu0 0
    %208 = vmatpush1.bf16.msra.mxu0 0
    %209 = vmatprep.subr.bf16.mxu0 0
    %210 = vmatpush1.bf16.msra.mxu0 0
    %211 = vmatprep.subr.bf16.mxu0 0
    %212 = vmatpush1.bf16.msra.mxu0 0
    %213 = vmatprep.mubr.bf16.mxu0 0
    %214 = vmatmul.mubr.bf16.gmra.mrb[0].mxu0 %v179
    %v215 = vpop.f32.mrb[0].mxu0
    %v216 = vadd.f32 0.0, %v215
    %v217 = vpop.f32.mrb[0].mxu0
    %v218 = vpop.f32.mrb[0].mxu0
    %v219 = vadd.f32 0.0, %v218
    %v220 = vpop.f32.mrb[0].mxu0
    %221 = vdwg.mxu0
    %v226 = vunpack.c.l.b16 %v157
    %v227 = vunpack.c.l.b16 %v158
    %v228 = vunpack.c.l.b16 %v159
    %v229 = vunpack.c.l.b16 %v160
    %v230 = vpack.c.b16 %v227, %v226
    %v231 = vpack.c.b16 %v229, %v228
    %v235 = vsel %vm177, %v155, 0
    %237 = vmatprep.subr.bf16.mxu0 0
    %238 = vmatpush1.bf16.msra.mxu0 %v230
    %239 = vmatprep.subr.bf16.mxu0 0
    %240 = vmatpush1.bf16.msra.mxu0 %v231
    %241 = vmatprep.subr.bf16.mxu0 0
    %242 = vmatpush1.bf16.msra.mxu0 0
    %243 = vmatprep.subr.bf16.mxu0 0
    %244 = vmatpush1.bf16.msra.mxu0 0
    %245 = vmatprep.subr.bf16.mxu0 0
    %246 = vmatpush1.bf16.msra.mxu0 0
    %247 = vmatprep.subr.bf16.mxu0 0
    %248 = vmatpush1.bf16.msra.mxu0 0
    %249 = vmatprep.subr.bf16.mxu0 0
    %250 = vmatpush1.bf16.msra.mxu0 0
    %251 = vmatprep.subr.bf16.mxu0 0
    %252 = vmatpush1.bf16.msra.mxu0 0
    %253 = vmatprep.subr.bf16.mxu0 0
    %254 = vmatpush1.bf16.msra.mxu0 0
    %255 = vmatprep.subr.bf16.mxu0 0
    %256 = vmatpush1.bf16.msra.mxu0 0
    %257 = vmatprep.subr.bf16.mxu0 0
    %258 = vmatpush1.bf16.msra.mxu0 0
    %259 = vmatprep.subr.bf16.mxu0 0
    %260 = vmatpush1.bf16.msra.mxu0 0
    %261 = vmatprep.subr.bf16.mxu0 0
    %262 = vmatpush1.bf16.msra.mxu0 0
    %263 = vmatprep.subr.bf16.mxu0 0
    %264 = vmatpush1.bf16.msra.mxu0 0
    %265 = vmatprep.subr.bf16.mxu0 0
    %266 = vmatpush1.bf16.msra.mxu0 0
    %267 = vmatprep.subr.bf16.mxu0 0
    %268 = vmatpush1.bf16.msra.mxu0 0
    %269 = vmatprep.mubr.bf16.mxu0 0
    %270 = vmatmul.mubr.bf16.gmra.mrb[0].mxu0 %v235
    %v271 = vpop.f32.mrb[0].mxu0
    %v272 = vadd.f32 %v216, %v271
    %v273 = vpop.f32.mrb[0].mxu0
    %v274 = vpop.f32.mrb[0].mxu0
    %v275 = vadd.f32 %v219, %v274
    %v276 = vpop.f32.mrb[0].mxu0
    %277 = vdwg.mxu0
    %v278 = vld [vmem:[%s4] sm:$0x1]
    %v280 = vlaneseq
    %v281 = vshrl.u32 %v280, 7
    %v282 = vsub.s32 0, %v281
    %v283 = vrot.slane %v278, %v282
    %v285 = vadd.f32 %v272, %v283
    %v286 = vadd.f32 %v275, %v283
    %v287 = vmax.f32 %v285, 0.0
    %v288 = vmax.f32 %v286, 0.0
    %v289 = vpack.c.bf16 %v288, %v287
    %v290 = vld [vmem:[%s5] sm:$0xf]
    %v291 = vld [vmem:[%s5 + $0x4] sm:$0xf]
    %v292 = vld [vmem:[%s5 + $0x8] sm:$0xf]
    %v293 = vld [vmem:[%s5 + $0xc] sm:$0xf]
    %v294 = vld [vmem:[%s5 + $0x10] sm:$0xf]
    %v295 = vld [vmem:[%s5 + $0x14] sm:$0xf]
    %v296 = vld [vmem:[%s5 + $0x18] sm:$0xf]
    %v297 = vld [vmem:[%s5 + $0x1c] sm:$0xf]
    %v298 = vld [vmem:[%s6] sm:$0x1]
    %v300 = vlaneseq
    %v301 = vshrl.u32 %v300, 7
    %v302 = vsub.s32 0, %v301
    %v303 = vrot.slane %v298, %v302
    %v313 = vunpack.c.l.b16 %v290
    %v314 = vunpack.c.l.b16 %v291
    %v315 = vunpack.c.l.b16 %v292
    %v316 = vunpack.c.l.b16 %v293
    %v317 = vunpack.c.l.b16 %v294
    %v318 = vunpack.c.l.b16 %v295
    %v319 = vunpack.c.l.b16 %v296
    %v320 = vunpack.c.l.b16 %v297
    %v321 = vpack.c.b16 %v314, %v313
    %v322 = vpack.c.b16 %v316, %v315
    %v323 = vpack.c.b16 %v318, %v317
    %v324 = vpack.c.b16 %v320, %v319
    %vm329 = vcmask 523264
    %v331 = vsel %vm329, %v289, 0
    %333 = vmatprep.subr.bf16.mxu0 0
    %334 = vmatpush1.bf16.msra.mxu0 %v321
    %335 = vmatprep.subr.bf16.mxu0 0
    %336 = vmatpush1.bf16.msra.mxu0 %v322
    %337 = vmatprep.subr.bf16.mxu0 0
    %338 = vmatpush1.bf16.msra.mxu0 %v323
    %339 = vmatprep.subr.bf16.mxu0 0
    %340 = vmatpush1.bf16.msra.mxu0 %v324
    %341 = vmatprep.subr.bf16.mxu0 0
    %342 = vmatpush1.bf16.msra.mxu0 0
    %343 = vmatprep.subr.bf16.mxu0 0
    %344 = vmatpush1.bf16.msra.mxu0 0
    %345 = vmatprep.subr.bf16.mxu0 0
    %346 = vmatpush1.bf16.msra.mxu0 0
    %347 = vmatprep.subr.bf16.mxu0 0
    %348 = vmatpush1.bf16.msra.mxu0 0
    %349 = vmatprep.subr.bf16.mxu0 0
    %350 = vmatpush1.bf16.msra.mxu0 0
    %351 = vmatprep.subr.bf16.mxu0 0
    %352 = vmatpush1.bf16.msra.mxu0 0
    %353 = vmatprep.subr.bf16.mxu0 0
    %354 = vmatpush1.bf16.msra.mxu0 0
    %355 = vmatprep.subr.bf16.mxu0 0
    %356 = vmatpush1.bf16.msra.mxu0 0
    %357 = vmatprep.subr.bf16.mxu0 0
    %358 = vmatpush1.bf16.msra.mxu0 0
    %359 = vmatprep.subr.bf16.mxu0 0
    %360 = vmatpush1.bf16.msra.mxu0 0
    %361 = vmatprep.subr.bf16.mxu0 0
    %362 = vmatpush1.bf16.msra.mxu0 0
    %363 = vmatprep.subr.bf16.mxu0 0
    %364 = vmatpush1.bf16.msra.mxu0 0
    %365 = vmatprep.mubr.bf16.mxu0 0
    %366 = vmatmul.mubr.bf16.gmra.mrb[0].mxu0 %v331
    %v367 = vpop.f32.mrb[0].mxu0
    %v368 = vadd.f32 %v303, %v367
    %v369 = vpop.f32.mrb[0].mxu0
    %v370 = vpop.f32.mrb[0].mxu0
    %v371 = vadd.f32 %v303, %v370
    %v372 = vpop.f32.mrb[0].mxu0
    %373 = vdwg.mxu0
    %374 = vst [vmem:[#allocation2] sm:$0xff] %v368
    %375 = vst [vmem:[#allocation2 + $0x8] sm:$0xff] %v371
    // Predicated region
    $region30: #{baseline_span_scorer_forward.1} parent=1 // pred_check
      _
    $region31: #{baseline_span_scorer_forward.1} parent=1 // pred_check_branch
      %377 = sbr.rel (0) target = $region33
    $region32: #{baseline_span_scorer_forward.1} parent=1 // pred_region
      %s379 = ssub.s32 256, 256
      %380 = vsyncadd [#allocation3], %s379
      %s381 = sshll.u32 [#allocation2], 4
      %s382 = int_to_ptr.vmem [resolvable:$true] %s381
      %387 = dma.vmem_to_hbm [thread:$0]  %s382, 256, %s7, [#allocation3], 128, 128, 8
    $region33: #{baseline_span_scorer_forward.1} parent=1 // pred_fallthru
      _
    // Predicated region
    $region34: #{baseline_span_scorer_forward.1} parent=1 // pred_check
      _
    $region35: #{baseline_span_scorer_forward.1} parent=1 // pred_check_branch
      %389 = sbr.rel (0) target = $region37
    $region36: #{baseline_span_scorer_forward.1} parent=1 // pred_region
      %390 = dma.done [#allocation3], 256
    $region37: #{baseline_span_scorer_forward.1} parent=1 // pred_fallthru
      _
    %391 = vsyncpa [#allocation3], 1

</llo_original>
